<compile_context>
chip_gen: v6e
topology: v6e:2x2x1
jax: 0.10.0
libtpu: 0.0.40
codegen_flags: <defaults>
</compile_context>

<pallas_src>
import functools

import numpy as np
import jax
import jax.numpy as jnp
from jax.experimental import pallas as pl
from jax.experimental.pallas import tpu as pltpu

WINDOW_SIZE = 11
SIGMA = 1.5


# ----------------------------------------------------------------------------
# Host-side constant construction (numpy, trace-time only).
# ----------------------------------------------------------------------------
def _gaussian_1d(window_size: int, sigma: float) -> np.ndarray:
    xs = np.arange(window_size, dtype=np.float64)
    g = np.exp(-((xs - window_size // 2) ** 2) / (2.0 * sigma ** 2))
    return (g / g.sum()).astype(np.float32)


def _band_matrix(n: int, gauss: np.ndarray) -> np.ndarray:
    """(n, n) banded matrix M with (M @ x)[i] = zero-padded 1D conv of x."""
    w = len(gauss)
    pad = w // 2
    m = np.zeros((n, n), dtype=np.float32)
    for i in range(n):
        for k in range(w):
            j = i + k - pad
            if 0 <= j < n:
                m[i, j] += float(gauss[k])
    return m


def _pick_row_tile(h: int) -> int:
    """Row-tile size for the vertical pass (multiple of 8, <=256, divides H)."""
    if h <= 256 or h % 8 != 0:
        return h
    for th in range(256, 63, -8):
        if h % th == 0:
            return th
    return h


def _vh_row_tiles(h: int, th: int, gauss: np.ndarray):
    """Per-row-tile band matrices + clamped input-row offsets (zero pad baked in)."""
    w = len(gauss)
    pad = w // 2
    n_t = h // th
    if n_t <= 1:
        return _band_matrix(h, gauss)[None], (0,), h
    kh = th + 16                                    # 8-row halo each side (aligned)
    tiles = np.zeros((n_t, th, kh), dtype=np.float32)
    offs = []
    for r in range(n_t):
        o = min(max(r * th - 8, 0), h - kh)          # clamped, multiple of 8
        offs.append(o)
        for i in range(th):
            row = r * th + i
            for k in range(w):
                j = row + k - pad
                if 0 <= j < h:
                    tiles[r, i, j - o] += float(gauss[k])
    return tiles, tuple(offs), kh


def _block_diag(block: np.ndarray, reps: int) -> np.ndarray:
    n = block.shape[0]
    out = np.zeros((n * reps, n * reps), dtype=np.float32)
    for r in range(reps):
        out[r * n:(r + 1) * n, r * n:(r + 1) * n] = block
    return out


def _vmem_capacity_bytes() -> int:
    try:
        return int(pltpu.get_tpu_info().vmem_capacity_bytes)
    except Exception:
        return 64 * 1024 * 1024                      # v7x-safe fallback


def _pick_group(n_planes: int, g_cap: int) -> int:
    """Largest divisor of n_planes <= g_cap, preferring >=2 grid steps (megacore)."""
    g_cap = max(1, min(g_cap, n_planes))
    divs = [d for d in range(1, g_cap + 1) if n_planes % d == 0]
    ok = [d for d in divs if n_planes // d >= 2]
    return max(ok) if ok else max(divs)


# ----------------------------------------------------------------------------
# Kernel: partial SSIM-map sum for one group of G planes.
# ----------------------------------------------------------------------------
def _ssim_sum_kernel(p_ref, t_ref, vh_ref, vw_ref, sum_ref, *,
                     n_planes, width, row_offsets, halo_rows, lane_packed):
    C1 = 0.01 ** 2
    C2 = 0.03 ** 2
    G, W = n_planes, width

    p = p_ref[...].astype(jnp.float32)               # (G, H, W)
    t = t_ref[...].astype(jnp.float32)

    # Stat-major / plane-minor lane layout: column block j = s*G + g.
    cols = []
    for s in (p, t, p * p, t * t, p * t):
        for g in range(G):
            cols.append(s[g])                        # (H, W)
    x = cols[0] if len(cols) == 1 else jnp.concatenate(cols, axis=1)   # (H, 5GW)

    # Vertical (row) pass: banded row-tile matmuls on the MXU, free dim = 5GW.
    vparts = []
    for r, off in enumerate(row_offsets):
        x_r = x[off:off + halo_rows, :]              # static, sublane-aligned slice
        vparts.append(jnp.dot(vh_ref[r], x_r, preferred_element_type=jnp.float32))
    vblur = vparts[0] if len(vparts) == 1 else jnp.concatenate(vparts, axis=0)

    # Horizontal (lane) pass.
    if lane_packed:
        # One matmul against the block-diagonal band matrix (small-W lane packing).
        hblur = jnp.dot(vblur, vw_ref[...], preferred_element_type=jnp.float32)
        gw = G * W
        stat = [hblur[:, s * gw:(s + 1) * gw] for s in range(5)]
    else:
        vw = vw_ref[...]                             # dense (W, W) band, stationary
        blocks = [jnp.dot(vblur[:, j * W:(j + 1) * W], vw,
                          preferred_element_type=jnp.float32)
                  for j in range(5 * G)]
        stat = [blocks[s * G] if G == 1
                else jnp.concatenate(blocks[s * G:(s + 1) * G], axis=1)
                for s in range(5)]

    mu1, mu2, pp_b, tt_b, pt_b = stat                # each (H, G*W)
    mu1_sq = mu1 * mu1
    mu2_sq = mu2 * mu2
    mu1_mu2 = mu1 * mu2
    sigma1_sq = pp_b - mu1_sq
    sigma2_sq = tt_b - mu2_sq
    sigma12 = pt_b - mu1_mu2

    num = (2.0 * mu1_mu2 + C1) * (2.0 * sigma12 + C2)
    den = (mu1_sq + mu2_sq + C1) * (sigma1_sq + sigma2_sq + C2)
    inv = pl.reciprocal(den, approx=True)            # EUP slot
    inv = inv * (2.0 - den * inv)                    # one Newton step -> ~exact f32

    sum_ref[...] = jnp.reshape(jnp.sum(num * inv), (1, 1, 1))


# ----------------------------------------------------------------------------
# Wrapper (matches torch SSIMLoss.forward semantics).
# ----------------------------------------------------------------------------
def ssim_loss(pred, target, window_size: int = WINDOW_SIZE, sigma: float = SIGMA):
    """1 - SSIM(pred, target). Accepts [B,3,H,W] or [H,W,3] like the torch module."""
    if pred.ndim == 3:
        pred = pred[None]
    if target.ndim == 3:
        target = target[None]
    if pred.shape[-1] == 3:
        pred = jnp.transpose(pred, (0, 3, 1, 2))
    if target.shape[-1] == 3:
        target = jnp.transpose(target, (0, 3, 1, 2))

    B, C, H, W = pred.shape
    n_planes = B * C

    gauss = _gaussian_1d(window_size, sigma)

    # Vertical-pass row tiling (band matrices, zero padding baked in).
    TH = _pick_row_tile(H)
    vh_tiles, row_offsets, KH = _vh_row_tiles(H, TH, gauss)

    lane_packed = W < 128

    # VMEM-derived planes-per-step (inputs x2 buffers + stats + 2 blur passes
    # + combine temps ~= 104 bytes/pixel/plane in f32).
    cap = _vmem_capacity_bytes()
    per_plane_bytes = 104 * H * W
    g_cap = max(1, int((0.4 * cap) // per_plane_bytes))
    g_cap = min(g_cap, 8)
    if lane_packed:
        g_cap = min(g_cap, max(1, 640 // (5 * W)))   # keep block-diag VW small
    G = _pick_group(n_planes, g_cap)
    n_steps = n_planes // G

    vw_band = _band_matrix(W, gauss).T               # right-multiply horizontal conv
    vw_host = _block_diag(vw_band, 5 * G) if lane_packed else vw_band

    vh = jnp.asarray(vh_tiles)                       # (n_row_tiles, TH, KH)
    vw = jnp.asarray(vw_host)
    p = pred.reshape(n_planes, H, W).astype(jnp.float32)
    t = target.reshape(n_planes, H, W).astype(jnp.float32)

    vmem_limit = int(min(
        max(per_plane_bytes * G * 2 + (vh.size + vw.size) * 8 + (4 << 20), 32 << 20),
        int(cap * 0.9)))

    kernel = functools.partial(
        _ssim_sum_kernel, n_planes=G, width=W,
        row_offsets=row_offsets, halo_rows=KH, lane_packed=lane_packed)

    partial_sums = pl.pallas_call(
        kernel,
        out_shape=jax.ShapeDtypeStruct((n_steps, 1, 1), jnp.float32),
        grid=(n_steps,),
        in_specs=[
            pl.BlockSpec((G, H, W), lambda i: (i, 0, 0)),
            pl.BlockSpec((G, H, W), lambda i: (i, 0, 0)),
            pl.BlockSpec(vh.shape, lambda i: (0, 0, 0)),
            pl.BlockSpec(vw.shape, lambda i: (0, 0)),
        ],
        out_specs=pl.BlockSpec((1, 1, 1), lambda i: (i, 0, 0)),
        compiler_params=pltpu.CompilerParams(
            dimension_semantics=("parallel",),
            vmem_limit_bytes=vmem_limit),
    )(p, t, vh, vw)

    return 1.0 - jnp.sum(partial_sums) / float(n_planes * H * W)


# ----------------------------------------------------------------------------
# Pure numpy reference (direct zero-padded 2D grouped conv).
# ----------------------------------------------------------------------------
def _ssim_loss_ref_numpy(pred, target, window_size=WINDOW_SIZE, sigma=SIGMA):
    g = _gaussian_1d(window_size, sigma).astype(np.float64)
    w2d = np.outer(g, g)
    B, C, H, W = pred.shape
    pad = window_size // 2

    def conv(x):  # x: (B*C, H, W)
        xp = np.pad(x, ((0, 0), (pad, pad), (pad, pad)))
        out = np.zeros_like(x)
        for u in range(window_size):
            for v in range(window_size):
                out += w2d[u, v] * xp[:, u:u + H, v:v + W]
        return out

    p = np.asarray(pred, dtype=np.float64).reshape(B * C, H, W)
    t = np.asarray(target, dtype=np.float64).reshape(B * C, H, W)
    C1, C2 = 0.01 ** 2, 0.03 ** 2
    mu1, mu2 = conv(p), conv(t)
    mu1_sq, mu2_sq, mu1_mu2 = mu1 * mu1, mu2 * mu2, mu1 * mu2
    s1 = conv(p * p) - mu1_sq
    s2 = conv(t * t) - mu2_sq
    s12 = conv(p * t) - mu1_mu2
    ssim_map = ((2 * mu1_mu2 + C1) * (2 * s12 + C2)) / (
        (mu1_sq + mu2_sq + C1) * (s1 + s2 + C2))
    return 1.0 - ssim_map.mean()


if __name__ == "__main__":
    key = jax.random.PRNGKey(0)
    k1, k2 = jax.random.split(key)
    B, C, H, W = 2, 3, 16, 16
    pred = jax.random.uniform(k1, (B, C, H, W), dtype=jnp.float32)
    target = jax.random.uniform(k2, (B, C, H, W), dtype=jnp.float32)

    loss = jax.block_until_ready(jax.jit(ssim_loss)(pred, target))

    ref = _ssim_loss_ref_numpy(np.asarray(pred), np.asarray(target))
    np.testing.assert_allclose(float(loss), float(ref), rtol=1e-4, atol=1e-4)

    print("KERNEL_OK")
</pallas_src>

<mosaic_0001>
module attributes {stable_mosaic.version = 11 : i64} {
  func.func @_ssim_sum_kernel(%arg0: i32, %arg1: memref<3x16x16xf32, #tpu.memory_space<vmem>>, %arg2: memref<3x16x16xf32, #tpu.memory_space<vmem>>, %arg3: memref<1x16x16xf32, #tpu.memory_space<vmem>>, %arg4: memref<240x240xf32, #tpu.memory_space<vmem>>, %arg5: memref<1x1x1xf32, #tpu.memory_space<vmem>>) attributes {dimension_semantics = [#tpu.dimension_semantics<parallel>], iteration_bounds = array<i64: 2>, scalar_prefetch = 0 : i64, scratch_operands = 0 : i64, tpu.core_type = #tpu.core_type<tc>, window_params = [{transform_indices = @transform_0, window_bounds = array<i64: 3, 16, 16>}, {transform_indices = @transform_1, window_bounds = array<i64: 3, 16, 16>}, {pipeline_mode = #tpu.pipeline_mode<synchronous>, transform_indices = @transform_2, window_bounds = array<i64: 1, 16, 16>}, {pipeline_mode = #tpu.pipeline_mode<synchronous>, transform_indices = @transform_3, window_bounds = array<i64: 240, 240>}, {transform_indices = @transform_4, window_bounds = array<i64: 1, 1, 1>}]} {
    %c0 = arith.constant 0 : index
    %c0_0 = arith.constant 0 : index
    %c0_1 = arith.constant 0 : index
    %0 = vector.load %arg1[%c0, %c0_0, %c0_1] : memref<3x16x16xf32, #tpu.memory_space<vmem>>, vector<3x16x16xf32>
    %c0_2 = arith.constant 0 : index
    %c0_3 = arith.constant 0 : index
    %c0_4 = arith.constant 0 : index
    %1 = vector.load %arg2[%c0_2, %c0_3, %c0_4] : memref<3x16x16xf32, #tpu.memory_space<vmem>>, vector<3x16x16xf32>
    %2 = arith.mulf %0, %0 : vector<3x16x16xf32>
    %3 = arith.mulf %1, %1 : vector<3x16x16xf32>
    %4 = arith.mulf %0, %1 : vector<3x16x16xf32>
    %5 = vector.extract_strided_slice %0 {offsets = [0, 0, 0], sizes = [1, 16, 16], strides = [1, 1, 1]} : vector<3x16x16xf32> to vector<1x16x16xf32>
    %6 = vector.shape_cast %5 : vector<1x16x16xf32> to vector<16x16xf32>
    %7 = vector.extract_strided_slice %0 {offsets = [1, 0, 0], sizes = [1, 16, 16], strides = [1, 1, 1]} : vector<3x16x16xf32> to vector<1x16x16xf32>
    %8 = vector.shape_cast %7 : vector<1x16x16xf32> to vector<16x16xf32>
    %9 = vector.extract_strided_slice %0 {offsets = [2, 0, 0], sizes = [1, 16, 16], strides = [1, 1, 1]} : vector<3x16x16xf32> to vector<1x16x16xf32>
    %10 = vector.shape_cast %9 : vector<1x16x16xf32> to vector<16x16xf32>
    %11 = vector.extract_strided_slice %1 {offsets = [0, 0, 0], sizes = [1, 16, 16], strides = [1, 1, 1]} : vector<3x16x16xf32> to vector<1x16x16xf32>
    %12 = vector.shape_cast %11 : vector<1x16x16xf32> to vector<16x16xf32>
    %13 = vector.extract_strided_slice %1 {offsets = [1, 0, 0], sizes = [1, 16, 16], strides = [1, 1, 1]} : vector<3x16x16xf32> to vector<1x16x16xf32>
    %14 = vector.shape_cast %13 : vector<1x16x16xf32> to vector<16x16xf32>
    %15 = vector.extract_strided_slice %1 {offsets = [2, 0, 0], sizes = [1, 16, 16], strides = [1, 1, 1]} : vector<3x16x16xf32> to vector<1x16x16xf32>
    %16 = vector.shape_cast %15 : vector<1x16x16xf32> to vector<16x16xf32>
    %17 = vector.extract_strided_slice %2 {offsets = [0, 0, 0], sizes = [1, 16, 16], strides = [1, 1, 1]} : vector<3x16x16xf32> to vector<1x16x16xf32>
    %18 = vector.shape_cast %17 : vector<1x16x16xf32> to vector<16x16xf32>
    %19 = vector.extract_strided_slice %2 {offsets = [1, 0, 0], sizes = [1, 16, 16], strides = [1, 1, 1]} : vector<3x16x16xf32> to vector<1x16x16xf32>
    %20 = vector.shape_cast %19 : vector<1x16x16xf32> to vector<16x16xf32>
    %21 = vector.extract_strided_slice %2 {offsets = [2, 0, 0], sizes = [1, 16, 16], strides = [1, 1, 1]} : vector<3x16x16xf32> to vector<1x16x16xf32>
    %22 = vector.shape_cast %21 : vector<1x16x16xf32> to vector<16x16xf32>
    %23 = vector.extract_strided_slice %3 {offsets = [0, 0, 0], sizes = [1, 16, 16], strides = [1, 1, 1]} : vector<3x16x16xf32> to vector<1x16x16xf32>
    %24 = vector.shape_cast %23 : vector<1x16x16xf32> to vector<16x16xf32>
    %25 = vector.extract_strided_slice %3 {offsets = [1, 0, 0], sizes = [1, 16, 16], strides = [1, 1, 1]} : vector<3x16x16xf32> to vector<1x16x16xf32>
    %26 = vector.shape_cast %25 : vector<1x16x16xf32> to vector<16x16xf32>
    %27 = vector.extract_strided_slice %3 {offsets = [2, 0, 0], sizes = [1, 16, 16], strides = [1, 1, 1]} : vector<3x16x16xf32> to vector<1x16x16xf32>
    %28 = vector.shape_cast %27 : vector<1x16x16xf32> to vector<16x16xf32>
    %29 = vector.extract_strided_slice %4 {offsets = [0, 0, 0], sizes = [1, 16, 16], strides = [1, 1, 1]} : vector<3x16x16xf32> to vector<1x16x16xf32>
    %30 = vector.shape_cast %29 : vector<1x16x16xf32> to vector<16x16xf32>
    %31 = vector.extract_strided_slice %4 {offsets = [1, 0, 0], sizes = [1, 16, 16], strides = [1, 1, 1]} : vector<3x16x16xf32> to vector<1x16x16xf32>
    %32 = vector.shape_cast %31 : vector<1x16x16xf32> to vector<16x16xf32>
    %33 = vector.extract_strided_slice %4 {offsets = [2, 0, 0], sizes = [1, 16, 16], strides = [1, 1, 1]} : vector<3x16x16xf32> to vector<1x16x16xf32>
    %34 = vector.shape_cast %33 : vector<1x16x16xf32> to vector<16x16xf32>
    %35 = tpu.concatenate %6, %8, %10, %12, %14, %16, %18, %20, %22, %24, %26, %28, %30, %32, %34 in 1 : vector<16x16xf32>, vector<16x16xf32>, vector<16x16xf32>, vector<16x16xf32>, vector<16x16xf32>, vector<16x16xf32>, vector<16x16xf32>, vector<16x16xf32>, vector<16x16xf32>, vector<16x16xf32>, vector<16x16xf32>, vector<16x16xf32>, vector<16x16xf32>, vector<16x16xf32>, vector<16x16xf32> -> vector<16x240xf32>
    %c0_5 = arith.constant 0 : index
    %c0_6 = arith.constant 0 : index
    %c0_7 = arith.constant 0 : index
    %36 = vector.load %arg3[%c0_5, %c0_6, %c0_7] : memref<1x16x16xf32, #tpu.memory_space<vmem>>, vector<1x16x16xf32>
    %37 = vector.shape_cast %36 : vector<1x16x16xf32> to vector<16x16xf32>
    %cst = arith.constant dense<0.000000e+00> : vector<16x240xf32>
    %38 = tpu.matmul %37, %35, %cst {dimension_numbers = #tpu.dot_dimension_numbers<[1], [0], [0], [1], [0, 0, 1, 1], [], []>} : vector<16x16xf32>, vector<16x240xf32>, vector<16x240xf32> -> vector<16x240xf32>
    %c0_8 = arith.constant 0 : index
    %c0_9 = arith.constant 0 : index
    %39 = vector.load %arg4[%c0_8, %c0_9] : memref<240x240xf32, #tpu.memory_space<vmem>>, vector<240x240xf32>
    %cst_10 = arith.constant dense<0.000000e+00> : vector<16x240xf32>
    %40 = tpu.matmul %38, %39, %cst_10 {dimension_numbers = #tpu.dot_dimension_numbers<[1], [0], [0], [1], [0, 0, 1, 1], [], []>} : vector<16x240xf32>, vector<240x240xf32>, vector<16x240xf32> -> vector<16x240xf32>
    %41 = vector.extract_strided_slice %40 {offsets = [0, 0], sizes = [16, 48], strides = [1, 1]} : vector<16x240xf32> to vector<16x48xf32>
    %42 = vector.extract_strided_slice %40 {offsets = [0, 48], sizes = [16, 48], strides = [1, 1]} : vector<16x240xf32> to vector<16x48xf32>
    %43 = vector.extract_strided_slice %40 {offsets = [0, 96], sizes = [16, 48], strides = [1, 1]} : vector<16x240xf32> to vector<16x48xf32>
    %44 = vector.extract_strided_slice %40 {offsets = [0, 144], sizes = [16, 48], strides = [1, 1]} : vector<16x240xf32> to vector<16x48xf32>
    %45 = vector.extract_strided_slice %40 {offsets = [0, 192], sizes = [16, 48], strides = [1, 1]} : vector<16x240xf32> to vector<16x48xf32>
    %46 = arith.mulf %41, %41 : vector<16x48xf32>
    %47 = arith.mulf %42, %42 : vector<16x48xf32>
    %48 = arith.mulf %41, %42 : vector<16x48xf32>
    %49 = arith.subf %43, %46 : vector<16x48xf32>
    %50 = arith.subf %44, %47 : vector<16x48xf32>
    %51 = arith.subf %45, %48 : vector<16x48xf32>
    %cst_11 = arith.constant 2.000000e+00 : f32
    %52 = vector.broadcast %cst_11 : f32 to vector<16x48xf32>
    %53 = arith.mulf %52, %48 : vector<16x48xf32>
    %cst_12 = arith.constant 9.99999974E-5 : f32
    %54 = vector.broadcast %cst_12 : f32 to vector<16x48xf32>
    %55 = arith.addf %53, %54 : vector<16x48xf32>
    %cst_13 = arith.constant 2.000000e+00 : f32
    %56 = vector.broadcast %cst_13 : f32 to vector<16x48xf32>
    %57 = arith.mulf %56, %51 : vector<16x48xf32>
    %cst_14 = arith.constant 8.99999984E-4 : f32
    %58 = vector.broadcast %cst_14 : f32 to vector<16x48xf32>
    %59 = arith.addf %57, %58 : vector<16x48xf32>
    %60 = arith.mulf %55, %59 : vector<16x48xf32>
    %61 = arith.addf %46, %47 : vector<16x48xf32>
    %cst_15 = arith.constant 9.99999974E-5 : f32
    %62 = vector.broadcast %cst_15 : f32 to vector<16x48xf32>
    %63 = arith.addf %61, %62 : vector<16x48xf32>
    %64 = arith.addf %49, %50 : vector<16x48xf32>
    %cst_16 = arith.constant 8.99999984E-4 : f32
    %65 = vector.broadcast %cst_16 : f32 to vector<16x48xf32>
    %66 = arith.addf %64, %65 : vector<16x48xf32>
    %67 = arith.mulf %63, %66 : vector<16x48xf32>
    %68 = tpu.reciprocal %67 {approx = true} : vector<16x48xf32> -> vector<16x48xf32>
    %69 = arith.mulf %67, %68 : vector<16x48xf32>
    %cst_17 = arith.constant 2.000000e+00 : f32
    %70 = vector.broadcast %cst_17 : f32 to vector<16x48xf32>
    %71 = arith.subf %70, %69 : vector<16x48xf32>
    %72 = arith.mulf %68, %71 : vector<16x48xf32>
    %73 = arith.mulf %60, %72 : vector<16x48xf32>
    %74 = vector.shape_cast %73 : vector<16x48xf32> to vector<1x16x48xf32>
    %cst_18 = arith.constant dense<0.000000e+00> : vector<1xf32>
    %75 = vector.multi_reduction <add>, %74, %cst_18 [1, 2] : vector<1x16x48xf32> to vector<1xf32>
    %76 = vector.shape_cast %75 : vector<1xf32> to vector<1x1x1xf32>
    %77 = vector.extract %76[0, 0, 0] : f32 from vector<1x1x1xf32>
    %78 = vector.broadcast %77 : f32 to vector<1x1x1xf32>
    %c0_19 = arith.constant 0 : index
    %c0_20 = arith.constant 0 : index
    %c0_21 = arith.constant 0 : index
    %79 = vector.load %arg5[%c0_19, %c0_20, %c0_21] : memref<1x1x1xf32, #tpu.memory_space<vmem>>, vector<1x1x1xf32>
    tpu.vector_store %arg5[%c0_19, %c0_20, %c0_21], %78 {strides = array<i32>} : memref<1x1x1xf32, #tpu.memory_space<vmem>>, vector<1x1x1xf32>,
    return
  }
  func.func @transform_0(%arg0: i32) -> (i32, i32, i32) {
    %c0_i32 = arith.constant 0 : i32
    %c0_i32_0 = arith.constant 0 : i32
    %c0_i32_1 = arith.constant 0 : i32
    return %arg0, %c0_i32, %c0_i32_0 : i32, i32, i32
  }
  func.func @transform_1(%arg0: i32) -> (i32, i32, i32) {
    %c0_i32 = arith.constant 0 : i32
    %c0_i32_0 = arith.constant 0 : i32
    %c0_i32_1 = arith.constant 0 : i32
    return %arg0, %c0_i32, %c0_i32_0 : i32, i32, i32
  }
  func.func @transform_2(%arg0: i32) -> (i32, i32, i32) {
    %c0_i32 = arith.constant 0 : i32
    %c0_i32_0 = arith.constant 0 : i32
    %c0_i32_1 = arith.constant 0 : i32
    %c0_i32_2 = arith.constant 0 : i32
    return %c0_i32, %c0_i32_0, %c0_i32_1 : i32, i32, i32
  }
  func.func @transform_3(%arg0: i32) -> (i32, i32) {
    %c0_i32 = arith.constant 0 : i32
    %c0_i32_0 = arith.constant 0 : i32
    %c0_i32_1 = arith.constant 0 : i32
    return %c0_i32, %c0_i32_0 : i32, i32
  }
  func.func @transform_4(%arg0: i32) -> (i32, i32, i32) {
    %c0_i32 = arith.constant 0 : i32
    %c0_i32_0 = arith.constant 0 : i32
    %c0_i32_1 = arith.constant 0 : i32
    return %arg0, %c0_i32, %c0_i32_0 : i32, i32, i32
  }
}

</mosaic_0001>

<llo_original>
// kernel: ssim_loss.1
$region0: #{ssim_loss.1}
  #allocation0 [shape = 'u32[]', space=smem, size = 0x4, offset = 0x4, fixed_abs, tag = 'smem constant byte address 0x4 - core index']
  #allocation1 [shape = 'u32[144,128]{1,0:T(1,128)}', space=vmem, size = 0x12000, scoped, tag = 'internal scratch']
  %s0 = inlined_call_operand.hbm [shape: f32[6,16,16], index: 0, kind: input, shape index: {}]
  %s1 = inlined_call_operand.hbm [shape: f32[6,16,16], index: 1, kind: input, shape index: {}]
  %s2 = inlined_call_operand.hbm [shape: f32[1,16,16], index: 2, kind: input, shape index: {}]
  %s3 = inlined_call_operand.hbm [shape: f32[240,240], index: 3, kind: input, shape index: {}]
  %s4 = inlined_call_operand.vmem [shape: f32[2,1,1], index: 4, kind: output, shape index: {}]
  %s5 = sld [smem:[#allocation0]]
  $region65: #{ssim_loss.1} parent=0
    _
  %s7 = ssub.s32 1, %s5
  %s8 = scalar_select 0, %s7, %s5
  $region1: #{ssim_loss.1} parent=0
    #allocation2 [shape = 'u8[49152]{0}', space=vmem, size = 0xc000, scoped, tag = 'input window, operand 0']
    #allocation3 [shape = 's32[2]{0}', space=sflag, size = 0x8, scoped, tag = 'scoped memory for ssim_loss.1']
    #allocation4 [shape = 'u8[49152]{0}', space=vmem, size = 0xc000, scoped, tag = 'input window, operand 1']
    #allocation5 [shape = 's32[2]{0}', space=sflag, size = 0x8, scoped, tag = 'scoped memory for ssim_loss.1']
    #allocation6 [shape = 'u8[8192]{0}', space=vmem, size = 0x2000, scoped, tag = 'input window, operand 2, single buffered']
    #allocation7 [shape = 'u8[245760]{0}', space=vmem, size = 0x3c000, scoped, tag = 'input window, operand 3, single buffered']
    #allocation8 [shape = 's32[1]{0}', space=sflag, size = 0x4, scoped, tag = 'scoped memory for ssim_loss.1']
    %9 = vsyncpa [#allocation3], 0
    %s10 = scalar_lea.sflag [#allocation3], 1
    %11 = vsyncpa %s10, 0
    %12 = vsyncpa [#allocation5], 0
    %s13 = scalar_lea.sflag [#allocation5], 1
    %14 = vsyncpa %s13, 0
    %15 = vsyncpa [#allocation8], 0
    loop: start=0, step=1, limit=4
    $region2: #{ssim_loss.1} parent=1 // loop_pre_header
      _
    $region3: #{ssim_loss.1} parent=1 // loop_header
      %s17 = sphi 0, %s21
      %p18 = scmp.ge.s32.totalorder %s17, 4
      %s27 = sphi 0, %s29
      %s30 = sphi 0, %s27
      %s31 = sphi 0, %s30
      %s47 = sphi 0, %s31
      %s53 = sphi 0, %s55
      %s56 = sphi 0, %s53
      %s57 = sphi 0, %s56
      %s73 = sphi 0, %s57
      %s77 = sphi 0, %s77
      %s79 = sphi 0, %s77
      %s80 = sphi 0, %s79
      %s94 = sphi 0, %s80
      %s98 = sphi 0, %s98
      %s100 = sphi 0, %s98
      %s101 = sphi 0, %s100
      %s115 = sphi 0, %s101
      %s121 = sphi 0, %s123
      %s124 = sphi 0, %s121
      %s125 = sphi 0, %s124
      %s141 = sphi 0, %s125
    $region4: #{ssim_loss.1} parent=1 // loop_header_branch
      %20 = sbr.rel (%p18) target = $region8
    $region5: #{ssim_loss.1} parent=1 // loop_body
      %s22 = ssub.s32 %s17, 1
      %s23 = ssub.s32 %s17, 2
      %s24 = sadd.s32 %s17, 1
      %s25 = ssub.s32 %s17, %s24
      %p26 = scmp.eq.s32.totalorder %s25, 0
      %s28 = sadd.s32 %s27, 1
      %s29 = scalar_select %p26, %s27, %s28
      %p32 = pneg %p26
      %p33 = scmp.eq.s32.totalorder %s17, 1
      %p34 = por %p32, %p33
      %p35 = scmp.ne.s32.totalorder %s27, %s30
      %p36 = scmp.eq.s32.totalorder %s17, 0
      %p37 = por %p35, %p36
      %p38 = scmp.ne.s32.totalorder %s27, %s30
      %p39 = scmp.eq.s32.totalorder %s22, 1
      %p40 = por %p38, %p39
      %p41 = scmp.ne.s32.totalorder %s30, %s31
      %p42 = scmp.eq.s32.totalorder %s22, 0
      %p43 = por %p41, %p42
      %p44 = scmp.ne.s32.totalorder %s30, %s31
      %p45 = scmp.eq.s32.totalorder %s23, 1
      %p46 = por %p44, %p45
      %p48 = scmp.ne.s32.totalorder %s31, %s47
      %p49 = scmp.eq.s32.totalorder %s23, 0
      %p50 = por %p48, %p49
      %s51 = ssub.s32 %s17, %s24
      %p52 = scmp.eq.s32.totalorder %s51, 0
      %s54 = sadd.s32 %s53, 1
      %s55 = scalar_select %p52, %s53, %s54
      %p58 = pneg %p52
      %p59 = scmp.eq.s32.totalorder %s17, 1
      %p60 = por %p58, %p59
      %p61 = scmp.ne.s32.totalorder %s53, %s56
      %p62 = scmp.eq.s32.totalorder %s17, 0
      %p63 = por %p61, %p62
      %p64 = scmp.ne.s32.totalorder %s53, %s56
      %p65 = scmp.eq.s32.totalorder %s22, 1
      %p66 = por %p64, %p65
      %p67 = scmp.ne.s32.totalorder %s56, %s57
      %p68 = scmp.eq.s32.totalorder %s22, 0
      %p69 = por %p67, %p68
      %p70 = scmp.ne.s32.totalorder %s56, %s57
      %p71 = scmp.eq.s32.totalorder %s23, 1
      %p72 = por %p70, %p71
      %p74 = scmp.ne.s32.totalorder %s57, %s73
      %p75 = scmp.eq.s32.totalorder %s23, 0
      %p76 = por %p74, %p75
      %s78 = sadd.s32 %s77, 1
      %p81 = scmp.eq.s32.totalorder %s17, 1
      %p82 = scmp.ne.s32.totalorder %s77, %s79
      %p83 = scmp.eq.s32.totalorder %s17, 0
      %p84 = por %p82, %p83
      %p85 = scmp.ne.s32.totalorder %s77, %s79
      %p86 = scmp.eq.s32.totalorder %s22, 1
      %p87 = por %p85, %p86
      %p88 = scmp.ne.s32.totalorder %s79, %s80
      %p89 = scmp.eq.s32.totalorder %s22, 0
      %p90 = por %p88, %p89
      %p91 = scmp.ne.s32.totalorder %s79, %s80
      %p92 = scmp.eq.s32.totalorder %s23, 1
      %p93 = por %p91, %p92
      %p95 = scmp.ne.s32.totalorder %s80, %s94
      %p96 = scmp.eq.s32.totalorder %s23, 0
      %p97 = por %p95, %p96
      %s99 = sadd.s32 %s98, 1
      %p102 = scmp.eq.s32.totalorder %s17, 1
      %p103 = scmp.ne.s32.totalorder %s98, %s100
      %p104 = scmp.eq.s32.totalorder %s17, 0
      %p105 = por %p103, %p104
      %p106 = scmp.ne.s32.totalorder %s98, %s100
      %p107 = scmp.eq.s32.totalorder %s22, 1
      %p108 = por %p106, %p107
      %p109 = scmp.ne.s32.totalorder %s100, %s101
      %p110 = scmp.eq.s32.totalorder %s22, 0
      %p111 = por %p109, %p110
      %p112 = scmp.ne.s32.totalorder %s100, %s101
      %p113 = scmp.eq.s32.totalorder %s23, 1
      %p114 = por %p112, %p113
      %p116 = scmp.ne.s32.totalorder %s101, %s115
      %p117 = scmp.eq.s32.totalorder %s23, 0
      %p118 = por %p116, %p117
      %s119 = ssub.s32 %s17, %s24
      %p120 = scmp.eq.s32.totalorder %s119, 0
      %s122 = sadd.s32 %s121, 1
      %s123 = scalar_select %p120, %s121, %s122
      %p126 = pneg %p120
      %p127 = scmp.eq.s32.totalorder %s17, 1
      %p128 = por %p126, %p127
      %p129 = scmp.ne.s32.totalorder %s121, %s124
      %p130 = scmp.eq.s32.totalorder %s17, 0
      %p131 = por %p129, %p130
      %p132 = scmp.ne.s32.totalorder %s121, %s124
      %p133 = scmp.eq.s32.totalorder %s22, 1
      %p134 = por %p132, %p133
      %p135 = scmp.ne.s32.totalorder %s124, %s125
      %p136 = scmp.eq.s32.totalorder %s22, 0
      %p137 = por %p135, %p136
      %p138 = scmp.ne.s32.totalorder %s124, %s125
      %p139 = scmp.eq.s32.totalorder %s23, 1
      %p140 = por %p138, %p139
      %p142 = scmp.ne.s32.totalorder %s125, %s141
      %p143 = scmp.eq.s32.totalorder %s23, 0
      %p144 = por %p142, %p143
      %p145 = scmp.le.s32.totalorder 1, %s17
      %p146 = scmp.lt.s32.totalorder %s17, 3
      %p147 = pnand %p145, %p146
      %p148 = pneg %p147
      // Predicated region
      $region9: #{ssim_loss.1} parent=5 // pred_check
        _
      $region10: #{ssim_loss.1} parent=5 // pred_check_branch
        %150 = sbr.rel (%p147) target = $region12
      $region11: #{ssim_loss.1} parent=5 // pred_region
        %s151 = ssub.s32 %s17, 1
        // Predicated region
        $region13: #{ssim_loss.1} parent=11 // pred_check
          %p152 = pneg %p90
        $region14: #{ssim_loss.1} parent=11 // pred_check_branch
          %154 = sbr.rel (%p152) target = $region16
        $region15: #{ssim_loss.1} parent=11 // pred_region
          %s156 = ssub.s32 256, 256
          %157 = vsyncadd [#allocation5], %s156
          %s158 = sshll.u32 [#allocation6], 4
          %s159 = int_to_ptr.vmem [resolvable:$true] %s158
          %164 = dma.hbm_to_vmem [thread:$0]  %s2, 256, %s159, [#allocation5], 128, 128, 8
        $region16: #{ssim_loss.1} parent=11 // pred_fallthru
          _
        // Predicated region
        $region17: #{ssim_loss.1} parent=11 // pred_check
          %p165 = pneg %p111
        $region18: #{ssim_loss.1} parent=11 // pred_check_branch
          %167 = sbr.rel (%p165) target = $region20
        $region19: #{ssim_loss.1} parent=11 // pred_region
          %s169 = ssub.s32 7680, 7680
          %170 = vsyncadd [#allocation8], %s169
          %s171 = sshll.u32 [#allocation7], 4
          %s172 = int_to_ptr.vmem [resolvable:$true] %s171
          %177 = dma.hbm_to_vmem [thread:$0]  %s3, 7680, %s172, [#allocation8], 256, 256, 16
        $region20: #{ssim_loss.1} parent=11 // pred_fallthru
          _
      $region12: #{ssim_loss.1} parent=5 // pred_fallthru
        _
      %p178 = scmp.lt.s32.totalorder %s17, 2
      // Predicated region
      $region21: #{ssim_loss.1} parent=5 // pred_check
        %p179 = pneg %p178
      $region22: #{ssim_loss.1} parent=5 // pred_check_branch
        %181 = sbr.rel (%p179) target = $region24
      $region23: #{ssim_loss.1} parent=5 // pred_region
        // Predicated region
        $region25: #{ssim_loss.1} parent=23 // pred_check
          %p182 = pneg %p37
        $region26: #{ssim_loss.1} parent=23 // pred_check_branch
          %184 = sbr.rel (%p182) target = $region28
        $region27: #{ssim_loss.1} parent=23 // pred_region
          %s185 = sand.u32 %s27, 1
          %s186 = scalar_lea.sflag [#allocation3], %s185
          %s187 = sand.u32 %s27, 1
          %s188 = smul.addr %s187, 48
          %s189 = scalar_lea.vmem [#allocation2], %s188
          %s190 = smul.u32 3, %s17
          %s192 = ssub.s32 768, 768
          %193 = vsyncadd %s186, %s192
          %s194 = smul.addr %s190, 2
          %s195 = smul.addr %s194, 128
          %s196 = scalar_lea.hbm %s0, %s195
          %s197 = sshll.u32 %s189, 4
          %s198 = int_to_ptr.vmem [resolvable:$true] %s197
          %203 = dma.hbm_to_vmem [thread:$0]  %s196, 768, %s198, %s186, 128, 128, 8
        $region28: #{ssim_loss.1} parent=23 // pred_fallthru
          _
        // Predicated region
        $region29: #{ssim_loss.1} parent=23 // pred_check
          %p204 = pneg %p63
        $region30: #{ssim_loss.1} parent=23 // pred_check_branch
          %206 = sbr.rel (%p204) target = $region32
        $region31: #{ssim_loss.1} parent=23 // pred_region
          %s207 = sand.u32 %s17, 1
          %s208 = scalar_lea.sflag [#allocation5], %s207
          %s209 = sand.u32 %s53, 1
          %s210 = smul.addr %s209, 48
          %s211 = scalar_lea.vmem [#allocation4], %s210
          %s212 = smul.u32 3, %s17
          %s214 = ssub.s32 768, 768
          %215 = vsyncadd %s208, %s214
          %s216 = smul.addr %s212, 2
          %s217 = smul.addr %s216, 128
          %s218 = scalar_lea.hbm %s1, %s217
          %s219 = sshll.u32 %s211, 4
          %s220 = int_to_ptr.vmem [resolvable:$true] %s219
          %225 = dma.hbm_to_vmem [thread:$0]  %s218, 768, %s220, %s208, 128, 128, 8
        $region32: #{ssim_loss.1} parent=23 // pred_fallthru
          _
      $region24: #{ssim_loss.1} parent=5 // pred_fallthru
        _
      %p226 = scmp.le.s32.totalorder 1, %s17
      %p227 = scmp.lt.s32.totalorder %s17, 3
      %p228 = pnand %p226, %p227
      %p229 = pneg %p228
      // Predicated region
      $region33: #{ssim_loss.1} parent=5 // pred_check
        _
      $region34: #{ssim_loss.1} parent=5 // pred_check_branch
        %231 = sbr.rel (%p228) target = $region36
      $region35: #{ssim_loss.1} parent=5 // pred_region
        %s232 = ssub.s32 %s17, 1
        %s233 = sand.u32 %s30, 1
        %s234 = scalar_lea.sflag [#allocation3], %s233
        %s235 = sand.u32 %s30, 1
        %s236 = smul.addr %s235, 48
        %s237 = scalar_lea.vmem [#allocation2], %s236
        // Predicated region
        $region37: #{ssim_loss.1} parent=35 // pred_check
          %p238 = pneg %p43
        $region38: #{ssim_loss.1} parent=35 // pred_check_branch
          %240 = sbr.rel (%p238) target = $region40
        $region39: #{ssim_loss.1} parent=35 // pred_region
          %241 = dma.done %s234, 768
        $region40: #{ssim_loss.1} parent=35 // pred_fallthru
          _
        %s242 = sand.u32 %s22, 1
        %s243 = scalar_lea.sflag [#allocation5], %s242
        %s244 = sand.u32 %s56, 1
        %s245 = smul.addr %s244, 48
        %s246 = scalar_lea.vmem [#allocation4], %s245
        // Predicated region
        $region41: #{ssim_loss.1} parent=35 // pred_check
          %p247 = pneg %p69
        $region42: #{ssim_loss.1} parent=35 // pred_check_branch
          %249 = sbr.rel (%p247) target = $region44
        $region43: #{ssim_loss.1} parent=35 // pred_region
          %250 = dma.done %s243, 768
        $region44: #{ssim_loss.1} parent=35 // pred_fallthru
          _
        // Predicated region
        $region45: #{ssim_loss.1} parent=35 // pred_check
          %p251 = pneg %p90
        $region46: #{ssim_loss.1} parent=35 // pred_check_branch
          %253 = sbr.rel (%p251) target = $region48
        $region47: #{ssim_loss.1} parent=35 // pred_region
          %254 = dma.done [#allocation5], 256
        $region48: #{ssim_loss.1} parent=35 // pred_fallthru
          _
        // Predicated region
        $region49: #{ssim_loss.1} parent=35 // pred_check
          %p255 = pneg %p111
        $region50: #{ssim_loss.1} parent=35 // pred_check_branch
          %257 = sbr.rel (%p255) target = $region52
        $region51: #{ssim_loss.1} parent=35 // pred_region
          %258 = dma.done [#allocation8], 7680
        $region52: #{ssim_loss.1} parent=35 // pred_fallthru
          _
        %s259 = sand.u32 %s30, 1
        %s260 = scalar_lea.sflag [#allocation3], %s259
        %s261 = sand.u32 %s30, 1
        %s262 = smul.addr %s261, 48
        %s263 = scalar_lea.vmem [#allocation2], %s262
        %p264 = pneg %p43
        %p265 = pneg %p40
        %s266 = sand.u32 %s22, 1
        %s267 = scalar_lea.sflag [#allocation5], %s266
        %s268 = sand.u32 %s56, 1
        %s269 = smul.addr %s268, 48
        %s270 = scalar_lea.vmem [#allocation4], %s269
        %p271 = pneg %p69
        %p272 = pneg %p66
        %p273 = pneg %p90
        %p274 = pneg %p87
        %p275 = pneg %p111
        %p276 = pneg %p108
        %p277 = pneg %p137
        %p278 = pneg %p134
        %p279 = scmp.lt.s32.totalorder %s22, 1
        %s280 = scalar_select %p279, %s22, 1
        %s281 = scalar_lea.vmem %s4, %s280
        %s282 = smul.u32 3, %s22
        %s283 = smul.u32 3, %s22
        %p284 = scmp.lt.s32.totalorder %s22, 1
        %s285 = scalar_select %p284, %s22, 1
        %s286 = scalar_lea.vmem %s4, %s285
        %v287 = vld [vmem:[%s237] sm:$0xff]
        %v288 = vld [vmem:[%s237 + $0x8] sm:$0xff]
        %v289 = vld [vmem:[%s237 + $0x10] sm:$0xff]
        %v290 = vld [vmem:[%s237 + $0x18] sm:$0xff]
        %v291 = vld [vmem:[%s237 + $0x20] sm:$0xff]
        %v292 = vld [vmem:[%s237 + $0x28] sm:$0xff]
        %v293 = vld [vmem:[%s246] sm:$0xff]
        %v294 = vld [vmem:[%s246 + $0x8] sm:$0xff]
        %v295 = vld [vmem:[%s246 + $0x10] sm:$0xff]
        %v296 = vld [vmem:[%s246 + $0x18] sm:$0xff]
        %v297 = vld [vmem:[%s246 + $0x20] sm:$0xff]
        %v298 = vld [vmem:[%s246 + $0x28] sm:$0xff]
        %v299 = vmul.f32 %v287, %v287
        %v300 = vmul.f32 %v288, %v288
        %v301 = vmul.f32 %v289, %v289
        %v302 = vmul.f32 %v290, %v290
        %v303 = vmul.f32 %v291, %v291
        %v304 = vmul.f32 %v292, %v292
        %v305 = vmul.f32 %v293, %v293
        %v306 = vmul.f32 %v294, %v294
        %v307 = vmul.f32 %v295, %v295
        %v308 = vmul.f32 %v296, %v296
        %v309 = vmul.f32 %v297, %v297
        %v310 = vmul.f32 %v298, %v298
        %v311 = vmul.f32 %v287, %v293
        %v312 = vmul.f32 %v288, %v294
        %v313 = vmul.f32 %v289, %v295
        %v314 = vmul.f32 %v290, %v296
        %v315 = vmul.f32 %v291, %v297
        %v316 = vmul.f32 %v292, %v298
        %319 = vrot.lane.b32.xlu0 %v289, 16
        %v320 = vpop.permute.xlu0 %319
        %321 = vrot.lane.b32.xlu0 %v290, 16
        %v322 = vpop.permute.xlu0 %321
        %327 = vrot.lane.b32.xlu0 %v291, 32
        %v328 = vpop.permute.xlu0 %327
        %329 = vrot.lane.b32.xlu0 %v292, 32
        %v330 = vpop.permute.xlu0 %329
        %335 = vrot.lane.b32.xlu0 %v293, 48
        %v336 = vpop.permute.xlu0 %335
        %337 = vrot.lane.b32.xlu0 %v294, 48
        %v338 = vpop.permute.xlu0 %337
        %343 = vrot.lane.b32.xlu0 %v295, 64
        %v344 = vpop.permute.xlu0 %343
        %345 = vrot.lane.b32.xlu0 %v296, 64
        %v346 = vpop.permute.xlu0 %345
        %351 = vrot.lane.b32.xlu0 %v297, 80
        %v352 = vpop.permute.xlu0 %351
        %353 = vrot.lane.b32.xlu0 %v298, 80
        %v354 = vpop.permute.xlu0 %353
        %359 = vrot.lane.b32.xlu0 %v299, 96
        %v360 = vpop.permute.xlu0 %359
        %361 = vrot.lane.b32.xlu0 %v300, 96
        %v362 = vpop.permute.xlu0 %361
        %367 = vrot.lane.b32.xlu0 %v301, 112
        %v368 = vpop.permute.xlu0 %367
        %369 = vrot.lane.b32.xlu0 %v302, 112
        %v370 = vpop.permute.xlu0 %369
        %375 = vrot.lane.b32.xlu0 %v305, 16
        %v376 = vpop.permute.xlu0 %375
        %377 = vrot.lane.b32.xlu0 %v306, 16
        %v378 = vpop.permute.xlu0 %377
        %383 = vrot.lane.b32.xlu0 %v307, 32
        %v384 = vpop.permute.xlu0 %383
        %385 = vrot.lane.b32.xlu0 %v308, 32
        %v386 = vpop.permute.xlu0 %385
        %391 = vrot.lane.b32.xlu0 %v309, 48
        %v392 = vpop.permute.xlu0 %391
        %393 = vrot.lane.b32.xlu0 %v310, 48
        %v394 = vpop.permute.xlu0 %393
        %399 = vrot.lane.b32.xlu0 %v311, 64
        %v400 = vpop.permute.xlu0 %399
        %401 = vrot.lane.b32.xlu0 %v312, 64
        %v402 = vpop.permute.xlu0 %401
        %407 = vrot.lane.b32.xlu0 %v313, 80
        %v408 = vpop.permute.xlu0 %407
        %409 = vrot.lane.b32.xlu0 %v314, 80
        %v410 = vpop.permute.xlu0 %409
        %415 = vrot.lane.b32.xlu0 %v315, 96
        %v416 = vpop.permute.xlu0 %415
        %417 = vrot.lane.b32.xlu0 %v316, 96
        %v418 = vpop.permute.xlu0 %417
        %vm421 = vcmask 130048
        %v422 = vsel %vm421, %v287, %v320
        %v423 = vsel %vm421, %v288, %v322
        %vm424 = vcmask 261120
        %v425 = vsel %vm424, %v422, %v328
        %v426 = vsel %vm424, %v423, %v330
        %vm427 = vcmask 392192
        %v428 = vsel %vm427, %v425, %v336
        %v429 = vsel %vm427, %v426, %v338
        %vm430 = vcmask 523264
        %v431 = vsel %vm430, %v428, %v344
        %v432 = vsel %vm430, %v429, %v346
        %vm433 = vcmask 654336
        %v434 = vsel %vm433, %v431, %v352
        %v435 = vsel %vm433, %v432, %v354
        %vm436 = vcmask 785408
        %v437 = vsel %vm436, %v434, %v360
        %v438 = vsel %vm436, %v435, %v362
        %vm439 = vcmask 916480
        %v440 = vsel %vm439, %v437, %v368
        %v441 = vsel %vm439, %v438, %v370
        %v442 = vsel %vm421, %v303, %v376
        %v443 = vsel %vm421, %v304, %v378
        %v444 = vsel %vm424, %v442, %v384
        %v445 = vsel %vm424, %v443, %v386
        %v446 = vsel %vm427, %v444, %v392
        %v447 = vsel %vm427, %v445, %v394
        %v448 = vsel %vm430, %v446, %v400
        %v449 = vsel %vm430, %v447, %v402
        %v450 = vsel %vm433, %v448, %v408
        %v451 = vsel %vm433, %v449, %v410
        %v452 = vsel %vm436, %v450, %v416
        %v453 = vsel %vm436, %v451, %v418
        %v454 = vld [vmem:[#allocation6] sm:$0xff]
        %v455 = vld [vmem:[#allocation6 + $0x8] sm:$0xff]
        %v457 = vsel %vm421, %v454, 0
        %v460 = vsel %vm421, %v455, 0
        %462 = vmatprep.subr.mxu0 0.0
        %463 = vmatpush1.msra.mxu0 0.0
        %464 = vmatprep.subr.mxu0 0.0
        %465 = vmatpush1.msra.mxu0 0.0
        %466 = vmatprep.subr.mxu0 0.0
        %467 = vmatpush1.msra.mxu0 0.0
        %468 = vmatprep.subr.mxu0 0.0
        %469 = vmatpush1.msra.mxu0 0.0
        %470 = vmatprep.subr.mxu0 0.0
        %471 = vmatpush1.msra.mxu0 0.0
        %472 = vmatprep.subr.mxu0 0.0
        %473 = vmatpush1.msra.mxu0 0.0
        %474 = vmatprep.subr.mxu0 0.0
        %475 = vmatpush1.msra.mxu0 0.0
        %476 = vmatprep.subr.mxu0 0.0
        %477 = vmatpush1.msra.mxu0 0.0
        %478 = vmatprep.subr.mxu0 0.0
        %479 = vmatpush1.msra.mxu0 0.0
        %480 = vmatprep.subr.mxu0 0.0
        %481 = vmatpush1.msra.mxu0 0.0
        %482 = vmatprep.subr.mxu0 0.0
        %483 = vmatpush1.msra.mxu0 0.0
        %484 = vmatprep.subr.mxu0 0.0
        %485 = vmatpush1.msra.mxu0 0.0
        %486 = vmatprep.subr.mxu0 0.0
        %487 = vmatpush1.msra.mxu0 0.0
        %488 = vmatprep.subr.mxu0 0.0
        %489 = vmatpush1.msra.mxu0 0.0
        %490 = vmatprep.subr.mxu0 %v453
        %491 = vmatpush1.msra.mxu0 %v441
        %492 = vmatprep.subr.mxu0 %v452
        %493 = vmatpush1.msra.mxu0 %v440
        %494 = vmatprep.subr.mxu0 0.0
        %495 = vmatpush2.msra.mxu0 0.0
        %496 = vmatprep.subr.mxu0 0.0
        %497 = vmatpush2.msra.mxu0 0.0
        %498 = vmatprep.subr.mxu0 0.0
        %499 = vmatpush2.msra.mxu0 0.0
        %500 = vmatprep.subr.mxu0 0.0
        %501 = vmatpush2.msra.mxu0 0.0
        %502 = vmatprep.subr.mxu0 0.0
        %503 = vmatpush2.msra.mxu0 0.0
        %504 = vmatprep.subr.mxu0 0.0
        %505 = vmatpush2.msra.mxu0 0.0
        %506 = vmatprep.subr.mxu0 0.0
        %507 = vmatpush2.msra.mxu0 0.0
        %508 = vmatprep.subr.mxu0 0.0
        %509 = vmatpush2.msra.mxu0 0.0
        %510 = vmatprep.subr.mxu0 0.0
        %511 = vmatpush2.msra.mxu0 0.0
        %512 = vmatprep.subr.mxu0 0.0
        %513 = vmatpush2.msra.mxu0 0.0
        %514 = vmatprep.subr.mxu0 0.0
        %515 = vmatpush2.msra.mxu0 0.0
        %516 = vmatprep.subr.mxu0 0.0
        %517 = vmatpush2.msra.mxu0 0.0
        %518 = vmatprep.subr.mxu0 0.0
        %519 = vmatpush2.msra.mxu0 0.0
        %520 = vmatprep.subr.mxu0 0.0
        %521 = vmatpush2.msra.mxu0 0.0
        %522 = vmatprep.subr.mxu0 0.0
        %523 = vmatpush2.msra.mxu0 0.0
        %524 = vmatprep.subr.mxu0 0.0
        %525 = vmatpush2.msra.mxu0 0.0
        %526 = vmatprep.mubr.f32.mxu0 0.0
        %527 = vmatmul.mubr.f32.gmra.mxu0 %v457
        %v528 = vpop.f32.mrf.mxu0
        %v529 = vadd.f32 0.0, %v528
        %v530 = vpop.f32.mrf.mxu0
        %v531 = vadd.f32 0.0, %v530
        %532 = vmatprep.mubr.f32.mxu0 0.0
        %533 = vmatmul.mubr.f32.gmra.mxu0 %v460
        %v534 = vpop.f32.mrf.mxu0
        %v535 = vadd.f32 0.0, %v534
        %v536 = vpop.f32.mrf.mxu0
        %v537 = vadd.f32 0.0, %v536
        %538 = vdwg.mxu0
        %v539 = vld [vmem:[#allocation7] sm:$0xff]
        %v540 = vld [vmem:[#allocation7 + $0x8] sm:$0xff]
        %v541 = vld [vmem:[#allocation7 + $0x10] sm:$0xff]
        %v542 = vld [vmem:[#allocation7 + $0x18] sm:$0xff]
        %v543 = vld [vmem:[#allocation7 + $0x20] sm:$0xff]
        %v544 = vld [vmem:[#allocation7 + $0x28] sm:$0xff]
        %v545 = vld [vmem:[#allocation7 + $0x30] sm:$0xff]
        %v546 = vld [vmem:[#allocation7 + $0x38] sm:$0xff]
        %v547 = vld [vmem:[#allocation7 + $0x40] sm:$0xff]
        %v548 = vld [vmem:[#allocation7 + $0x48] sm:$0xff]
        %v549 = vld [vmem:[#allocation7 + $0x50] sm:$0xff]
        %v550 = vld [vmem:[#allocation7 + $0x58] sm:$0xff]
        %v551 = vld [vmem:[#allocation7 + $0x60] sm:$0xff]
        %v552 = vld [vmem:[#allocation7 + $0x68] sm:$0xff]
        %v553 = vld [vmem:[#allocation7 + $0x70] sm:$0xff]
        %v554 = vld [vmem:[#allocation7 + $0x78] sm:$0xff]
        %v555 = vld [vmem:[#allocation7 + $0x80] sm:$0xff]
        %v556 = vld [vmem:[#allocation7 + $0x88] sm:$0xff]
        %v557 = vld [vmem:[#allocation7 + $0x90] sm:$0xff]
        %v558 = vld [vmem:[#allocation7 + $0x98] sm:$0xff]
        %v559 = vld [vmem:[#allocation7 + $0xa0] sm:$0xff]
        %v560 = vld [vmem:[#allocation7 + $0xa8] sm:$0xff]
        %v561 = vld [vmem:[#allocation7 + $0xb0] sm:$0xff]
        %v562 = vld [vmem:[#allocation7 + $0xb8] sm:$0xff]
        %v563 = vld [vmem:[#allocation7 + $0xc0] sm:$0xff]
        %v564 = vld [vmem:[#allocation7 + $0xc8] sm:$0xff]
        %v565 = vld [vmem:[#allocation7 + $0xd0] sm:$0xff]
        %v566 = vld [vmem:[#allocation7 + $0xd8] sm:$0xff]
        %v567 = vld [vmem:[#allocation7 + $0xe0] sm:$0xff]
        %v568 = vld [vmem:[#allocation7 + $0xe8] sm:$0xff]
        %v569 = vld [vmem:[#allocation7 + $0xf0] sm:$0xff]
        %v570 = vld [vmem:[#allocation7 + $0xf8] sm:$0xff]
        %v571 = vld [vmem:[#allocation7 + $0x100] sm:$0xff]
        %v572 = vld [vmem:[#allocation7 + $0x108] sm:$0xff]
        %v573 = vld [vmem:[#allocation7 + $0x110] sm:$0xff]
        %v574 = vld [vmem:[#allocation7 + $0x118] sm:$0xff]
        %v575 = vld [vmem:[#allocation7 + $0x120] sm:$0xff]
        %v576 = vld [vmem:[#allocation7 + $0x128] sm:$0xff]
        %v577 = vld [vmem:[#allocation7 + $0x130] sm:$0xff]
        %v578 = vld [vmem:[#allocation7 + $0x138] sm:$0xff]
        %v579 = vld [vmem:[#allocation7 + $0x140] sm:$0xff]
        %v580 = vld [vmem:[#allocation7 + $0x148] sm:$0xff]
        %v581 = vld [vmem:[#allocation7 + $0x150] sm:$0xff]
        %v582 = vld [vmem:[#allocation7 + $0x158] sm:$0xff]
        %v583 = vld [vmem:[#allocation7 + $0x160] sm:$0xff]
        %v584 = vld [vmem:[#allocation7 + $0x168] sm:$0xff]
        %v585 = vld [vmem:[#allocation7 + $0x170] sm:$0xff]
        %v586 = vld [vmem:[#allocation7 + $0x178] sm:$0xff]
        %v587 = vld [vmem:[#allocation7 + $0x180] sm:$0xff]
        %v588 = vld [vmem:[#allocation7 + $0x188] sm:$0xff]
        %v589 = vld [vmem:[#allocation7 + $0x190] sm:$0xff]
        %v590 = vld [vmem:[#allocation7 + $0x198] sm:$0xff]
        %v591 = vld [vmem:[#allocation7 + $0x1a0] sm:$0xff]
        %v592 = vld [vmem:[#allocation7 + $0x1a8] sm:$0xff]
        %v593 = vld [vmem:[#allocation7 + $0x1b0] sm:$0xff]
        %v594 = vld [vmem:[#allocation7 + $0x1b8] sm:$0xff]
        %v595 = vld [vmem:[#allocation7 + $0x1c0] sm:$0xff]
        %v596 = vld [vmem:[#allocation7 + $0x1c8] sm:$0xff]
        %v597 = vld [vmem:[#allocation7 + $0x1d0] sm:$0xff]
        %v598 = vld [vmem:[#allocation7 + $0x1d8] sm:$0xff]
        %v600 = vsel %vm439, %v531, 0
        %v603 = vsel %vm439, %v537, 0
        %605 = vmatprep.subr.mxu0 %v570
        %606 = vmatpush1.msra.mxu0 %v569
        %607 = vmatprep.subr.mxu0 %v568
        %608 = vmatpush1.msra.mxu0 %v567
        %609 = vmatprep.subr.mxu0 %v566
        %610 = vmatpush1.msra.mxu0 %v565
        %611 = vmatprep.subr.mxu0 %v564
        %612 = vmatpush1.msra.mxu0 %v563
        %613 = vmatprep.subr.mxu0 %v562
        %614 = vmatpush1.msra.mxu0 %v561
        %615 = vmatprep.subr.mxu0 %v560
        %616 = vmatpush1.msra.mxu0 %v559
        %617 = vmatprep.subr.mxu0 %v558
        %618 = vmatpush1.msra.mxu0 %v557
        %619 = vmatprep.subr.mxu0 %v556
        %620 = vmatpush1.msra.mxu0 %v555
        %621 = vmatprep.subr.mxu0 %v554
        %622 = vmatpush1.msra.mxu0 %v553
        %623 = vmatprep.subr.mxu0 %v552
        %624 = vmatpush1.msra.mxu0 %v551
        %625 = vmatprep.subr.mxu0 %v550
        %626 = vmatpush1.msra.mxu0 %v549
        %627 = vmatprep.subr.mxu0 %v548
        %628 = vmatpush1.msra.mxu0 %v547
        %629 = vmatprep.subr.mxu0 %v546
        %630 = vmatpush1.msra.mxu0 %v545
        %631 = vmatprep.subr.mxu0 %v544
        %632 = vmatpush1.msra.mxu0 %v543
        %633 = vmatprep.subr.mxu0 %v542
        %634 = vmatpush1.msra.mxu0 %v541
        %635 = vmatprep.subr.mxu0 %v540
        %636 = vmatpush1.msra.mxu0 %v539
        %637 = vmatprep.subr.mxu0 0.0
        %638 = vmatpush2.msra.mxu0 0.0
        %639 = vmatprep.subr.mxu0 0.0
        %640 = vmatpush2.msra.mxu0 0.0
        %641 = vmatprep.subr.mxu0 %v598
        %642 = vmatpush2.msra.mxu0 %v597
        %643 = vmatprep.subr.mxu0 %v596
        %644 = vmatpush2.msra.mxu0 %v595
        %645 = vmatprep.subr.mxu0 %v594
        %646 = vmatpush2.msra.mxu0 %v593
        %647 = vmatprep.subr.mxu0 %v592
        %648 = vmatpush2.msra.mxu0 %v591
        %649 = vmatprep.subr.mxu0 %v590
        %650 = vmatpush2.msra.mxu0 %v589
        %651 = vmatprep.subr.mxu0 %v588
        %652 = vmatpush2.msra.mxu0 %v587
        %653 = vmatprep.subr.mxu0 %v586
        %654 = vmatpush2.msra.mxu0 %v585
        %655 = vmatprep.subr.mxu0 %v584
        %656 = vmatpush2.msra.mxu0 %v583
        %657 = vmatprep.subr.mxu0 %v582
        %658 = vmatpush2.msra.mxu0 %v581
        %659 = vmatprep.subr.mxu0 %v580
        %660 = vmatpush2.msra.mxu0 %v579
        %661 = vmatprep.subr.mxu0 %v578
        %662 = vmatpush2.msra.mxu0 %v577
        %663 = vmatprep.subr.mxu0 %v576
        %664 = vmatpush2.msra.mxu0 %v575
        %665 = vmatprep.subr.mxu0 %v574
        %666 = vmatpush2.msra.mxu0 %v573
        %667 = vmatprep.subr.mxu0 %v572
        %668 = vmatpush2.msra.mxu0 %v571
        %669 = vmatprep.mubr.f32.mxu0 %v600
        %670 = vmatmul.mubr.f32.gmra.mxu0 %v529
        %v671 = vpop.f32.mrf.mxu0
        %v672 = vadd.f32 0.0, %v671
        %v673 = vpop.f32.mrf.mxu0
        %v674 = vadd.f32 0.0, %v673
        %675 = vmatprep.mubr.f32.mxu0 %v603
        %676 = vmatmul.mubr.f32.gmra.mxu0 %v535
        %v677 = vpop.f32.mrf.mxu0
        %v678 = vadd.f32 0.0, %v677
        %v679 = vpop.f32.mrf.mxu0
        %v680 = vadd.f32 0.0, %v679
        %681 = vdwg.mxu0
        %v682 = vmul.f32 %v672, %v672
        %v683 = vmul.f32 %v678, %v678
        %686 = vrot.lane.b32.xlu0 %v672, 80
        %v687 = vpop.permute.xlu0 %686
        %688 = vrot.lane.b32.xlu0 %v678, 80
        %v689 = vpop.permute.xlu0 %688
        %v692 = vmul.f32 %v672, %v687
        %v693 = vmul.f32 %v678, %v689
        %696 = vrot.lane.b32.xlu0 %v682, 96
        %v697 = vpop.permute.xlu0 %696
        %698 = vrot.lane.b32.xlu0 %v683, 96
        %v699 = vpop.permute.xlu0 %698
        %v702 = vsub.f32 %v672, %v697
        %v703 = vsub.f32 %v674, %v697
        %v704 = vsub.f32 %v678, %v699
        %v705 = vsub.f32 %v680, %v699
        %708 = vrot.lane.b32.xlu0 %v692, 64
        %v709 = vpop.permute.xlu0 %708
        %710 = vrot.lane.b32.xlu0 %v693, 64
        %v711 = vpop.permute.xlu0 %710
        %v714 = vsub.f32 %v674, %v709
        %v715 = vsub.f32 %v680, %v711
        %v716 = vmul.f32 %v692, 2.0
        %v717 = vmul.f32 %v693, 2.0
        %v718 = vadd.f32 %v716, 0.0001
        %v719 = vadd.f32 %v717, 0.0001
        %v720 = vmul.f32 %v714, 2.0
        %v721 = vmul.f32 %v715, 2.0
        %v722 = vadd.f32 %v720, 0.0009
        %v723 = vadd.f32 %v721, 0.0009
        %726 = vrot.lane.b32.xlu0 %v722, 64
        %v727 = vpop.permute.xlu0 %726
        %728 = vrot.lane.b32.xlu0 %v723, 64
        %v729 = vpop.permute.xlu0 %728
        %v732 = vmul.f32 %v718, %v727
        %v733 = vmul.f32 %v719, %v729
        %734 = vrot.lane.b32.xlu0 %v682, 80
        %v735 = vpop.permute.xlu0 %734
        %736 = vrot.lane.b32.xlu0 %v683, 80
        %v737 = vpop.permute.xlu0 %736
        %v740 = vadd.f32 %v682, %v735
        %v741 = vadd.f32 %v683, %v737
        %v742 = vadd.f32 %v740, 0.0001
        %v743 = vadd.f32 %v741, 0.0001
        %746 = vrot.lane.b32.xlu0 %v703, 80
        %v747 = vpop.permute.xlu0 %746
        %748 = vrot.lane.b32.xlu0 %v705, 80
        %v749 = vpop.permute.xlu0 %748
        %v752 = vadd.f32 %v702, %v747
        %v753 = vadd.f32 %v703, %v747
        %v754 = vadd.f32 %v704, %v749
        %v755 = vadd.f32 %v705, %v749
        %v756 = vadd.f32 %v752, 0.0009
        %v757 = vadd.f32 %v753, 0.0009
        %v758 = vadd.f32 %v754, 0.0009
        %v759 = vadd.f32 %v755, 0.0009
        %764 = vrot.lane.b32.xlu0 %v756, 32
        %v765 = vpop.permute.xlu0 %764
        %766 = vrot.lane.b32.xlu0 %v757, 32
        %v767 = vpop.permute.xlu0 %766
        %768 = vrot.lane.b32.xlu0 %v758, 32
        %v769 = vpop.permute.xlu0 %768
        %770 = vrot.lane.b32.xlu0 %v759, 32
        %v771 = vpop.permute.xlu0 %770
        %v772 = vsel %vm424, %v765, %v767
        %v773 = vsel %vm424, %v769, %v771
        %v776 = vmul.f32 %v742, %v772
        %v777 = vmul.f32 %v743, %v773
        %v778 = vrcp.pop %v776
        %v779 = vrcp.pop %v777
        %v780 = vmul.f32 %v776, %v778
        %v781 = vmul.f32 %v777, %v779
        %v782 = vsub.f32 2.0, %v780
        %v783 = vsub.f32 2.0, %v781
        %v784 = vmul.f32 %v778, %v782
        %v785 = vmul.f32 %v779, %v783
        %v786 = vmul.f32 %v732, %v784
        %v787 = vmul.f32 %v733, %v785
        %v788 = vsel %vm427, %v786, 0.0
        %v789 = vsel %vm427, %v787, 0.0
        %v790 = vadd.f32 %v788, %v789
        %791 = vadd.xlane.f32.xlu0 %v790
        %v792 = vpop.xlane.xlu0 %791
        %v793 = vrot.slane %v792, 4
        %v794 = vadd.f32 %v792, %v793
        %v795 = vrot.slane %v794, 2
        %v796 = vadd.f32 %v794, %v795
        %v797 = vrot.slane %v796, 1
        %v798 = vadd.f32 %v796, %v797
        %s799 = vtos %v798
        %v800 = vstv %s799
        %vm801 = vcmask 0
        %802 = vst.msk [vmem:[%s286] sm:$0x1] %vm801, %v800
        %p803 = scmp.lt.s32.totalorder %s22, 1
        %s804 = scalar_select %p803, %s22, 1
        %s805 = scalar_lea.vmem %s4, %s804
        // Predicated region
        $region53: #{ssim_loss.1} parent=35 // pred_check
          %p806 = pneg %p134
        $region54: #{ssim_loss.1} parent=35 // pred_check_branch
          %808 = sbr.rel (%p806) target = $region56
        $region55: #{ssim_loss.1} parent=35 // pred_region
          _
        $region56: #{ssim_loss.1} parent=35 // pred_fallthru
          _
      $region36: #{ssim_loss.1} parent=5 // pred_fallthru
        _
      %p809 = scmp.le.s32.totalorder 2, %s17
      // Predicated region
      $region57: #{ssim_loss.1} parent=5 // pred_check
        %p810 = pneg %p809
      $region58: #{ssim_loss.1} parent=5 // pred_check_branch
        %812 = sbr.rel (%p810) target = $region60
      $region59: #{ssim_loss.1} parent=5 // pred_region
        %s813 = ssub.s32 %s17, 2
        // Predicated region
        $region61: #{ssim_loss.1} parent=59 // pred_check
          %p814 = pneg %p140
        $region62: #{ssim_loss.1} parent=59 // pred_check_branch
          %816 = sbr.rel (%p814) target = $region64
        $region63: #{ssim_loss.1} parent=59 // pred_region
          %p817 = scmp.lt.s32.totalorder %s23, 1
          %s818 = scalar_select %p817, %s23, 1
          %s819 = scalar_lea.vmem %s4, %s818
        $region64: #{ssim_loss.1} parent=59 // pred_fallthru
          _
      $region60: #{ssim_loss.1} parent=5 // pred_fallthru
        _
    $region6: #{ssim_loss.1} parent=1 // loop_footer
      %s21 = sadd.s32 1, %s17
    $region7: #{ssim_loss.1} parent=1 // loop_footer_branch
      %16 = sbr.rel target = $region3
    $region8: #{ssim_loss.1} parent=1 // loop_exit
      _
    %820 = vsyncpa [#allocation3], 1
    %s821 = scalar_lea.sflag [#allocation3], 1
    %822 = vsyncpa %s821, 1
    %823 = vsyncpa [#allocation5], 1
    %s824 = scalar_lea.sflag [#allocation5], 1
    %825 = vsyncpa %s824, 1
    %826 = vsyncpa [#allocation8], 1

</llo_original>
